<compile_context>
chip_gen: v6e
topology: v6e:2x2x1
jax: 0.10.0
libtpu: 0.0.40
codegen_flags: <defaults>
</compile_context>

<pallas_src>
import jax
import jax.numpy as jnp
from jax import lax
from jax.experimental import pallas as pl
from jax.experimental.pallas import tpu as pltpu

_EPS = 1e-12  # F.normalize default eps


def _round_up(x, m):
    return ((x + m - 1) // m) * m


def _isomax_kernel(scale_ref, feat_ref, proto_ref, out_ref):
    # scale_ref: (1,) SMEM scalar = -|distance_scale| / temperature
    # feat_ref:  (C, TN) tile of pixel feature columns (NCHW-native layout)
    # proto_ref: (K, C)  pre-normalized prototypes (grid-resident block)
    # out_ref:   (K, TN) logits tile (lane-dense: TN is a multiple of 128)
    f = feat_ref[...].astype(jnp.float32)                        # (C, TN)

    # Column-wise L2 norm: x / max(||x||, eps) == x * rsqrt(max(||x||^2, eps^2))
    sumsq = jnp.sum(f * f, axis=0, keepdims=True)                # (1, TN)
    fn = f * lax.rsqrt(jnp.maximum(sumsq, _EPS * _EPS))          # (C, TN)

    # Both operands unit-norm -> ||fn - pn||^2 = 2 - 2 <fn, pn>.
    cos = jnp.dot(proto_ref[...].astype(jnp.float32), fn,
                  preferred_element_type=jnp.float32)            # (K, TN) MXU
    dist = jnp.sqrt(jnp.maximum(2.0 - 2.0 * cos, 0.0))

    out_ref[...] = (scale_ref[0] * dist).astype(out_ref.dtype)


def isomax_plus_first_part(features, prototypes, distance_scale,
                           temperature=1.0, tile_cols=1024):
    """features: (B, C, H, W); prototypes: (K, C); distance_scale: (1,)."""
    B, C, H, W = features.shape
    K = prototypes.shape[0]
    HW = H * W

    # Hoisted once: normalize prototypes outside the kernel.
    p = prototypes.astype(jnp.float32)
    pn = p / jnp.maximum(jnp.linalg.norm(p, axis=-1, keepdims=True), _EPS)

    # Fold |scale|, negation and temperature into a single scalar.
    combined = (-jnp.abs(distance_scale.astype(jnp.float32))
                / jnp.float32(temperature))                       # (1,)

    # NCHW -> (B, C, HW): contiguous reshape, no transpose, no extra HBM pass.
    feats = features.reshape(B, C, HW)

    tn = _round_up(min(int(tile_cols), HW), 128)
    hw_padded = _round_up(HW, tn)
    if hw_padded != HW:
        feats = jnp.pad(feats, ((0, 0), (0, 0), (0, hw_padded - HW)))

    out = pl.pallas_call(
        _isomax_kernel,
        out_shape=jax.ShapeDtypeStruct((B, K, hw_padded), features.dtype),
        grid_spec=pltpu.PrefetchScalarGridSpec(
            num_scalar_prefetch=0,
            grid=(B, hw_padded // tn),
            in_specs=[
                pl.BlockSpec(memory_space=pltpu.SMEM),                # combined scalar
                pl.BlockSpec((None, C, tn), lambda b, j: (b, 0, j)),  # feature tile
                pl.BlockSpec((K, C), lambda b, j: (0, 0)),            # prototypes
            ],
            out_specs=pl.BlockSpec((None, K, tn), lambda b, j: (b, 0, j)),
        ),
        compiler_params=pltpu.CompilerParams(
            dimension_semantics=("parallel", "parallel")),
    )(combined, feats, pn)

    if hw_padded != HW:
        out = out[:, :, :HW]
    return out.reshape(B, K, H, W)


def _reference(features, prototypes, distance_scale, temperature):
    """Pure-JAX mirror of the PyTorch forward (true cdist formulation)."""
    B, C, H, W = features.shape
    K = prototypes.shape[0]
    f = jnp.transpose(features, (0, 2, 3, 1)).reshape(-1, C).astype(jnp.float32)
    fn = f / jnp.maximum(jnp.linalg.norm(f, axis=-1, keepdims=True), _EPS)
    p = prototypes.astype(jnp.float32)
    pn = p / jnp.maximum(jnp.linalg.norm(p, axis=-1, keepdims=True), _EPS)
    d = jnp.linalg.norm(fn[:, None, :] - pn[None, :, :], axis=-1)
    logits = -(jnp.abs(distance_scale[0]) * d) / temperature
    return jnp.transpose(logits.reshape(B, H, W, K), (0, 3, 1, 2))


if __name__ == "__main__":
    B, C, H, W = 2, 4, 16, 16
    num_features = C
    num_classes = 8
    temperature = 1.0

    key = jax.random.PRNGKey(0)
    k_feat, k_proto, k_feat2 = jax.random.split(key, 3)

    features = jax.random.normal(k_feat, (B, C, H, W), dtype=jnp.float32)
    # nn.init.normal_(prototypes, 0, 1); nn.init.constant_(distance_scale, 1)
    prototypes = jax.random.normal(k_proto, (num_classes, num_features),
                                   dtype=jnp.float32)
    distance_scale = jnp.ones((1,), dtype=jnp.float32)

    logits = isomax_plus_first_part(features, prototypes, distance_scale,
                                    temperature=temperature)
    logits = jax.block_until_ready(logits)
    ref = _reference(features, prototypes, distance_scale, temperature)
    assert logits.shape == (B, num_classes, H, W)
    assert jnp.allclose(logits, ref, atol=1e-4, rtol=1e-4), \
        float(jnp.max(jnp.abs(logits - ref)))

    # Second check: odd spatial size exercises the lane-padding path.
    H2, W2 = 10, 10
    features2 = jax.random.normal(k_feat2, (B, C, H2, W2), dtype=jnp.float32)
    logits2 = jax.block_until_ready(
        isomax_plus_first_part(features2, prototypes, distance_scale,
                               temperature=temperature))
    ref2 = _reference(features2, prototypes, distance_scale, temperature)
    assert logits2.shape == (B, num_classes, H2, W2)
    assert jnp.allclose(logits2, ref2, atol=1e-4, rtol=1e-4), \
        float(jnp.max(jnp.abs(logits2 - ref2)))

    print("KERNEL_OK")
</pallas_src>

<mosaic_0001>
module attributes {stable_mosaic.version = 11 : i64} {
  func.func @_isomax_kernel(%arg0: i32, %arg1: i32, %arg2: memref<1xf32, #tpu.memory_space<smem>>, %arg3: memref<1x4x256xf32, #tpu.memory_space<vmem>>, %arg4: memref<8x4xf32, #tpu.memory_space<vmem>>, %arg5: memref<1x8x256xf32, #tpu.memory_space<vmem>>) attributes {dimension_semantics = [#tpu.dimension_semantics<parallel>, #tpu.dimension_semantics<parallel>], iteration_bounds = array<i64: 2, 1>, scalar_prefetch = 0 : i64, scratch_operands = 0 : i64, tpu.core_type = #tpu.core_type<tc>, window_params = [{transform_indices = @transform_0, window_bounds = array<i64: 1>}, {transform_indices = @transform_1, window_bounds = array<i64: 1, 4, 256>}, {pipeline_mode = #tpu.pipeline_mode<synchronous>, transform_indices = @transform_2, window_bounds = array<i64: 8, 4>}, {transform_indices = @transform_3, window_bounds = array<i64: 1, 8, 256>}]} {
    %c0 = arith.constant 0 : index
    %c0_0 = arith.constant 0 : index
    %c0_1 = arith.constant 0 : index
    %0 = vector.load %arg3[%c0, %c0_0, %c0_1] : memref<1x4x256xf32, #tpu.memory_space<vmem>>, vector<1x4x256xf32>
    %1 = vector.shape_cast %0 : vector<1x4x256xf32> to vector<4x256xf32>
    %2 = arith.mulf %1, %1 : vector<4x256xf32>
    %cst = arith.constant dense<0.000000e+00> : vector<256xf32>
    %3 = vector.multi_reduction <add>, %2, %cst [0] : vector<4x256xf32> to vector<256xf32>
    %4 = vector.shape_cast %3 : vector<256xf32> to vector<1x256xf32>
    %cst_2 = arith.constant 1.000000e-24 : f32
    %5 = vector.broadcast %cst_2 : f32 to vector<1x256xf32>
    %6 = arith.maximumf %4, %5 : vector<1x256xf32>
    %7 = math.rsqrt %6 : vector<1x256xf32>
    %8 = vector.broadcast %7 : vector<1x256xf32> to vector<4x256xf32>
    %9 = arith.mulf %1, %8 : vector<4x256xf32>
    %c0_3 = arith.constant 0 : index
    %c0_4 = arith.constant 0 : index
    %10 = vector.load %arg4[%c0_3, %c0_4] : memref<8x4xf32, #tpu.memory_space<vmem>>, vector<8x4xf32>
    %cst_5 = arith.constant dense<0.000000e+00> : vector<8x256xf32>
    %11 = tpu.matmul %10, %9, %cst_5 {dimension_numbers = #tpu.dot_dimension_numbers<[1], [0], [0], [1], [0, 0, 1, 1], [], []>} : vector<8x4xf32>, vector<4x256xf32>, vector<8x256xf32> -> vector<8x256xf32>
    %cst_6 = arith.constant 2.000000e+00 : f32
    %12 = vector.broadcast %cst_6 : f32 to vector<8x256xf32>
    %13 = arith.mulf %12, %11 : vector<8x256xf32>
    %cst_7 = arith.constant 2.000000e+00 : f32
    %14 = vector.broadcast %cst_7 : f32 to vector<8x256xf32>
    %15 = arith.subf %14, %13 : vector<8x256xf32>
    %cst_8 = arith.constant 0.000000e+00 : f32
    %16 = vector.broadcast %cst_8 : f32 to vector<8x256xf32>
    %17 = arith.maximumf %15, %16 : vector<8x256xf32>
    %18 = math.sqrt %17 : vector<8x256xf32>
    %c0_9 = arith.constant 0 : index
    %19 = memref.load %arg2[%c0_9] : memref<1xf32, #tpu.memory_space<smem>>
    %20 = vector.broadcast %19 : f32 to vector<8x256xf32>
    %21 = arith.mulf %20, %18 : vector<8x256xf32>
    %c0_10 = arith.constant 0 : index
    %c0_11 = arith.constant 0 : index
    %c0_12 = arith.constant 0 : index
    %22 = vector.load %arg5[%c0_10, %c0_11, %c0_12] : memref<1x8x256xf32, #tpu.memory_space<vmem>>, vector<1x8x256xf32>
    %23 = vector.shape_cast %22 : vector<1x8x256xf32> to vector<8x256xf32>
    %24 = vector.shape_cast %21 : vector<8x256xf32> to vector<1x8x256xf32>
    tpu.vector_store %arg5[%c0_10, %c0_11, %c0_12], %24 {strides = array<i32>} : memref<1x8x256xf32, #tpu.memory_space<vmem>>, vector<1x8x256xf32>,
    return
  }
  func.func @transform_0(%arg0: i32, %arg1: i32) -> i32 {
    %c0_i32 = arith.constant 0 : i32
    %c0_i32_0 = arith.constant 0 : i32
    return %c0_i32 : i32
  }
  func.func @transform_1(%arg0: i32, %arg1: i32) -> (i32, i32, i32) {
    %c0_i32 = arith.constant 0 : i32
    %c0_i32_0 = arith.constant 0 : i32
    return %arg0, %c0_i32, %arg1 : i32, i32, i32
  }
  func.func @transform_2(%arg0: i32, %arg1: i32) -> (i32, i32) {
    %c0_i32 = arith.constant 0 : i32
    %c0_i32_0 = arith.constant 0 : i32
    %c0_i32_1 = arith.constant 0 : i32
    return %c0_i32, %c0_i32_0 : i32, i32
  }
  func.func @transform_3(%arg0: i32, %arg1: i32) -> (i32, i32, i32) {
    %c0_i32 = arith.constant 0 : i32
    %c0_i32_0 = arith.constant 0 : i32
    return %arg0, %c0_i32, %arg1 : i32, i32, i32
  }
}

</mosaic_0001>

<llo_original>
// kernel: tpu_custom_call.1
$region0: #{tpu_custom_call.1}
  #allocation0 [shape = 'u32[]', space=smem, size = 0x4, offset = 0x4, fixed_abs, tag = 'smem constant byte address 0x4 - core index']
  #allocation1 [shape = 'u32[144,128]{1,0:T(1,128)}', space=vmem, size = 0x12000, scoped, tag = 'internal scratch']
  #allocation2 [shape = 'f32[1]{0:T(128)S(6)}', space=smem, size = 0x200, scoped, tag = 'scoped memory for tpu_custom_call.1']
  %s0 = inlined_call_operand.<no memory space> [shape: f32[1], index: 0, kind: input, shape index: {}]
  %s1 = inlined_call_operand.hbm [shape: f32[2,4,256], index: 1, kind: input, shape index: {}]
  %s2 = inlined_call_operand.vmem [shape: f32[8,4], index: 2, kind: input, shape index: {}]
  %s3 = inlined_call_operand.hbm [shape: f32[2,8,256], index: 3, kind: output, shape index: {}]
  %s4 = sld [smem:[#allocation0]]
  $region49: #{tpu_custom_call.1} parent=0
    _
  %s6 = ssub.s32 1, %s4
  %s7 = scalar_select 0, %s6, %s4
  %8 = sst [smem:[#allocation2]] %s0
  $region1: #{tpu_custom_call.1} parent=0
    #allocation3 [shape = 'u8[8192]{0}', space=vmem, size = 0x2000, scoped, tag = 'input window, operand 1']
    #allocation4 [shape = 's32[2]{0}', space=sflag, size = 0x8, scoped, tag = 'scoped memory for tpu_custom_call.1']
    #allocation5 [shape = 's32[2]{0}', space=sflag, size = 0x8, scoped, tag = 'scoped memory for tpu_custom_call.1']
    #allocation6 [shape = 'u8[16384]{0}', space=vmem, size = 0x4000, scoped, tag = 'output window, operand 0']
    %9 = vsyncpa [#allocation4], 0
    %s10 = scalar_lea.sflag [#allocation4], 1
    %11 = vsyncpa %s10, 0
    %12 = vsyncpa [#allocation5], 0
    %s13 = scalar_lea.sflag [#allocation5], 1
    %14 = vsyncpa %s13, 0
    loop: start=0, step=1, limit=4
    $region2: #{tpu_custom_call.1} parent=1 // loop_pre_header
      _
    $region3: #{tpu_custom_call.1} parent=1 // loop_header
      %s16 = sphi 0, %s20
      %p17 = scmp.ge.s32.totalorder %s16, 4
      %s23 = sphi 0, %s35
      %s24 = sphi 0, %s31
      %s25 = sphi 0, %s23
      %s26 = sphi 0, %s24
      %s27 = sphi 0, %s25
      %s28 = sphi 0, %s26
      %s36 = sphi 0, %s36
      %s38 = sphi 0, %s36
      %s39 = sphi 0, %s38
      %s53 = sphi 0, %s39
      %s61 = sphi 0, %s63
      %s64 = sphi 0, %s61
      %s65 = sphi 0, %s64
      %s81 = sphi 0, %s65
      %s85 = sphi 0, %s85
      %s87 = sphi 0, %s85
      %s88 = sphi 0, %s87
      %s102 = sphi 0, %s88
      %s110 = sphi 0, %s112
      %s113 = sphi 0, %s110
      %s114 = sphi 0, %s113
      %s130 = sphi 0, %s114
    $region4: #{tpu_custom_call.1} parent=1 // loop_header_branch
      %19 = sbr.rel (%p17) target = $region8
    $region5: #{tpu_custom_call.1} parent=1 // loop_body
      %s21 = ssub.s32 %s16, 1
      %s22 = ssub.s32 %s16, 2
      %s29 = sadd.s32 1, %s24
      %p30 = scmp.ge.s32.totalorder %s29, 1
      %s31 = scalar_select %p30, 0, %s29
      %s32 = sadd.s32 1, %s23
      %s33 = scalar_select %p30, %s32, %s23
      %p34 = scmp.ge.s32.totalorder %s33, 2
      %s35 = scalar_select %p34, 0, %s33
      %s37 = sadd.s32 %s36, 1
      %p40 = scmp.eq.s32.totalorder %s16, 1
      %p41 = scmp.ne.s32.totalorder %s36, %s38
      %p42 = scmp.eq.s32.totalorder %s16, 0
      %p43 = por %p41, %p42
      %p44 = scmp.ne.s32.totalorder %s36, %s38
      %p45 = scmp.eq.s32.totalorder %s21, 1
      %p46 = por %p44, %p45
      %p47 = scmp.ne.s32.totalorder %s38, %s39
      %p48 = scmp.eq.s32.totalorder %s21, 0
      %p49 = por %p47, %p48
      %p50 = scmp.ne.s32.totalorder %s38, %s39
      %p51 = scmp.eq.s32.totalorder %s22, 1
      %p52 = por %p50, %p51
      %p54 = scmp.ne.s32.totalorder %s39, %s53
      %p55 = scmp.eq.s32.totalorder %s22, 0
      %p56 = por %p54, %p55
      %s57 = ssub.s32 %s23, %s35
      %s58 = ssub.s32 %s24, %s31
      %s59 = sor.u32 %s57, %s58
      %p60 = scmp.eq.s32.totalorder %s59, 0
      %s62 = sadd.s32 %s61, 1
      %s63 = scalar_select %p60, %s61, %s62
      %p66 = pneg %p60
      %p67 = scmp.eq.s32.totalorder %s16, 1
      %p68 = por %p66, %p67
      %p69 = scmp.ne.s32.totalorder %s61, %s64
      %p70 = scmp.eq.s32.totalorder %s16, 0
      %p71 = por %p69, %p70
      %p72 = scmp.ne.s32.totalorder %s61, %s64
      %p73 = scmp.eq.s32.totalorder %s21, 1
      %p74 = por %p72, %p73
      %p75 = scmp.ne.s32.totalorder %s64, %s65
      %p76 = scmp.eq.s32.totalorder %s21, 0
      %p77 = por %p75, %p76
      %p78 = scmp.ne.s32.totalorder %s64, %s65
      %p79 = scmp.eq.s32.totalorder %s22, 1
      %p80 = por %p78, %p79
      %p82 = scmp.ne.s32.totalorder %s65, %s81
      %p83 = scmp.eq.s32.totalorder %s22, 0
      %p84 = por %p82, %p83
      %s86 = sadd.s32 %s85, 1
      %p89 = scmp.eq.s32.totalorder %s16, 1
      %p90 = scmp.ne.s32.totalorder %s85, %s87
      %p91 = scmp.eq.s32.totalorder %s16, 0
      %p92 = por %p90, %p91
      %p93 = scmp.ne.s32.totalorder %s85, %s87
      %p94 = scmp.eq.s32.totalorder %s21, 1
      %p95 = por %p93, %p94
      %p96 = scmp.ne.s32.totalorder %s87, %s88
      %p97 = scmp.eq.s32.totalorder %s21, 0
      %p98 = por %p96, %p97
      %p99 = scmp.ne.s32.totalorder %s87, %s88
      %p100 = scmp.eq.s32.totalorder %s22, 1
      %p101 = por %p99, %p100
      %p103 = scmp.ne.s32.totalorder %s88, %s102
      %p104 = scmp.eq.s32.totalorder %s22, 0
      %p105 = por %p103, %p104
      %s106 = ssub.s32 %s23, %s35
      %s107 = ssub.s32 %s24, %s31
      %s108 = sor.u32 %s106, %s107
      %p109 = scmp.eq.s32.totalorder %s108, 0
      %s111 = sadd.s32 %s110, 1
      %s112 = scalar_select %p109, %s110, %s111
      %p115 = pneg %p109
      %p116 = scmp.eq.s32.totalorder %s16, 1
      %p117 = por %p115, %p116
      %p118 = scmp.ne.s32.totalorder %s110, %s113
      %p119 = scmp.eq.s32.totalorder %s16, 0
      %p120 = por %p118, %p119
      %p121 = scmp.ne.s32.totalorder %s110, %s113
      %p122 = scmp.eq.s32.totalorder %s21, 1
      %p123 = por %p121, %p122
      %p124 = scmp.ne.s32.totalorder %s113, %s114
      %p125 = scmp.eq.s32.totalorder %s21, 0
      %p126 = por %p124, %p125
      %p127 = scmp.ne.s32.totalorder %s113, %s114
      %p128 = scmp.eq.s32.totalorder %s22, 1
      %p129 = por %p127, %p128
      %p131 = scmp.ne.s32.totalorder %s114, %s130
      %p132 = scmp.eq.s32.totalorder %s22, 0
      %p133 = por %p131, %p132
      %p134 = scmp.le.s32.totalorder 1, %s16
      %p135 = scmp.lt.s32.totalorder %s16, 3
      %p136 = pnand %p134, %p135
      %p137 = pneg %p136
      // Predicated region
      $region9: #{tpu_custom_call.1} parent=5 // pred_check
        _
      $region10: #{tpu_custom_call.1} parent=5 // pred_check_branch
        %139 = sbr.rel (%p136) target = $region12
      $region11: #{tpu_custom_call.1} parent=5 // pred_region
        %s140 = ssub.s32 %s16, 1
        // Predicated region
        $region13: #{tpu_custom_call.1} parent=11 // pred_check
          %p141 = pneg %p49
        $region14: #{tpu_custom_call.1} parent=11 // pred_check_branch
          %143 = sbr.rel (%p141) target = $region16
        $region15: #{tpu_custom_call.1} parent=11 // pred_region
          _
        $region16: #{tpu_custom_call.1} parent=11 // pred_fallthru
          _
        // Predicated region
        $region17: #{tpu_custom_call.1} parent=11 // pred_check
          %p144 = pneg %p98
        $region18: #{tpu_custom_call.1} parent=11 // pred_check_branch
          %146 = sbr.rel (%p144) target = $region20
        $region19: #{tpu_custom_call.1} parent=11 // pred_region
          _
        $region20: #{tpu_custom_call.1} parent=11 // pred_fallthru
          _
      $region12: #{tpu_custom_call.1} parent=5 // pred_fallthru
        _
      %p147 = scmp.lt.s32.totalorder %s16, 2
      // Predicated region
      $region21: #{tpu_custom_call.1} parent=5 // pred_check
        %p148 = pneg %p147
      $region22: #{tpu_custom_call.1} parent=5 // pred_check_branch
        %150 = sbr.rel (%p148) target = $region24
      $region23: #{tpu_custom_call.1} parent=5 // pred_region
        // Predicated region
        $region25: #{tpu_custom_call.1} parent=23 // pred_check
          %p151 = pneg %p71
        $region26: #{tpu_custom_call.1} parent=23 // pred_check_branch
          %153 = sbr.rel (%p151) target = $region28
        $region27: #{tpu_custom_call.1} parent=23 // pred_region
          %s154 = sand.u32 %s61, 1
          %s155 = scalar_lea.sflag [#allocation4], %s154
          %s156 = sand.u32 %s61, 1
          %s157 = smul.addr %s156, 8
          %s158 = scalar_lea.vmem [#allocation3], %s157
          %s159 = smul.u32 2, %s24
          %s161 = ssub.s32 128, 128
          %162 = vsyncadd %s155, %s161
          %s163 = smul.addr %s23, 2
          %s164 = sadd.s32 %s159, %s163
          %s165 = smul.addr %s164, 64
          %s166 = scalar_lea.hbm %s1, %s165
          %s168 = sshll.u32 %s158, 4
          %s169 = int_to_ptr.vmem [resolvable:$true] %s168
          %171 = dma.hbm_to_vmem [thread:$0]  %s166, 128, %s169, %s155
        $region28: #{tpu_custom_call.1} parent=23 // pred_fallthru
          _
      $region24: #{tpu_custom_call.1} parent=5 // pred_fallthru
        _
      %p172 = scmp.le.s32.totalorder 1, %s16
      %p173 = scmp.lt.s32.totalorder %s16, 3
      %p174 = pnand %p172, %p173
      %p175 = pneg %p174
      // Predicated region
      $region29: #{tpu_custom_call.1} parent=5 // pred_check
        _
      $region30: #{tpu_custom_call.1} parent=5 // pred_check_branch
        %177 = sbr.rel (%p174) target = $region32
      $region31: #{tpu_custom_call.1} parent=5 // pred_region
        %s178 = ssub.s32 %s16, 1
        %s179 = sand.u32 %s64, 1
        %s180 = scalar_lea.sflag [#allocation4], %s179
        %s181 = sand.u32 %s64, 1
        %s182 = smul.addr %s181, 8
        %s183 = scalar_lea.vmem [#allocation3], %s182
        // Predicated region
        $region33: #{tpu_custom_call.1} parent=31 // pred_check
          %p184 = pneg %p77
        $region34: #{tpu_custom_call.1} parent=31 // pred_check_branch
          %186 = sbr.rel (%p184) target = $region36
        $region35: #{tpu_custom_call.1} parent=31 // pred_region
          %187 = dma.done %s180, 128
        $region36: #{tpu_custom_call.1} parent=31 // pred_fallthru
          _
        %p188 = pneg %p49
        %p189 = pneg %p46
        %s190 = sand.u32 %s64, 1
        %s191 = scalar_lea.sflag [#allocation4], %s190
        %s192 = sand.u32 %s64, 1
        %s193 = smul.addr %s192, 8
        %s194 = scalar_lea.vmem [#allocation3], %s193
        %p195 = pneg %p77
        %p196 = pneg %p74
        %p197 = pneg %p98
        %p198 = pneg %p95
        %p199 = pneg %p126
        %p200 = pneg %p123
        %s201 = sand.u32 %s113, 1
        %s202 = scalar_lea.sflag [#allocation5], %s201
        %s203 = sand.u32 %s113, 1
        %s204 = smul.addr %s203, 16
        %s205 = scalar_lea.vmem [#allocation6], %s204
        %s206 = smul.u32 2, %s26
        %s207 = smul.u32 2, %s26
        %v208 = vld [vmem:[%s183] sm:$0xff]
        %v209 = vmul.f32 %v208, %v208
        %v211 = vcombine.high %v209, %v209
        %vm213 = vcmask 1043456
        %v214 = vsel %vm213, %v209, 0.0
        %v215 = vrot.slane %v214, 4
        %v216 = vadd.f32 %v214, %v215
        %v217 = vrot.slane %v216, 2
        %v218 = vadd.f32 %v216, %v217
        %v219 = vrot.slane %v218, 1
        %v220 = vadd.f32 %v218, %v219
        %v221 = vsel %vm213, %v211, 0.0
        %v222 = vrot.slane %v221, 4
        %v223 = vadd.f32 %v221, %v222
        %v224 = vrot.slane %v223, 2
        %v225 = vadd.f32 %v223, %v224
        %v226 = vrot.slane %v225, 1
        %v227 = vadd.f32 %v225, %v226
        %v228 = vmax.f32 %v220, 1e-24
        %v229 = vmax.f32 %v227, 1e-24
        %v230 = vrsqrt.pop %v228
        %v231 = vrsqrt.pop %v229
        %v234 = vcombine.low %v230, %v231
        %v236 = vmul.f32 %v208, %v234
        %v237 = vld [vmem:[%s2] sm:$0xff]
        %v239 = vcombine.high %v236, %v236
        %vm240 = vcmask 31744
        %v242 = vsel %vm240, %v237, 0
        %v244 = vsel %vm213, %v236, 0
        %v246 = vsel %vm213, %v239, 0
        %248 = vmatprep.subr.mxu0 0.0
        %249 = vmatpush1.msra.mxu0 0.0
        %250 = vmatprep.subr.mxu0 0.0
        %251 = vmatpush1.msra.mxu0 0.0
        %252 = vmatprep.subr.mxu0 0.0
        %253 = vmatpush1.msra.mxu0 0.0
        %254 = vmatprep.subr.mxu0 0.0
        %255 = vmatpush1.msra.mxu0 0.0
        %256 = vmatprep.subr.mxu0 0.0
        %257 = vmatpush1.msra.mxu0 0.0
        %258 = vmatprep.subr.mxu0 0.0
        %259 = vmatpush1.msra.mxu0 0.0
        %260 = vmatprep.subr.mxu0 0.0
        %261 = vmatpush1.msra.mxu0 0.0
        %262 = vmatprep.subr.mxu0 0.0
        %263 = vmatpush1.msra.mxu0 0.0
        %264 = vmatprep.subr.mxu0 0.0
        %265 = vmatpush1.msra.mxu0 0.0
        %266 = vmatprep.subr.mxu0 0.0
        %267 = vmatpush1.msra.mxu0 0.0
        %268 = vmatprep.subr.mxu0 0.0
        %269 = vmatpush1.msra.mxu0 0.0
        %270 = vmatprep.subr.mxu0 0.0
        %271 = vmatpush1.msra.mxu0 0.0
        %272 = vmatprep.subr.mxu0 0.0
        %273 = vmatpush1.msra.mxu0 0.0
        %274 = vmatprep.subr.mxu0 0.0
        %275 = vmatpush1.msra.mxu0 0.0
        %276 = vmatprep.subr.mxu0 0.0
        %277 = vmatpush1.msra.mxu0 0.0
        %278 = vmatprep.subr.mxu0 %v246
        %279 = vmatpush1.msra.mxu0 %v244
        %280 = vmatprep.subr.mxu0 0.0
        %281 = vmatpush2.msra.mxu0 0.0
        %282 = vmatprep.subr.mxu0 0.0
        %283 = vmatpush2.msra.mxu0 0.0
        %284 = vmatprep.subr.mxu0 0.0
        %285 = vmatpush2.msra.mxu0 0.0
        %286 = vmatprep.subr.mxu0 0.0
        %287 = vmatpush2.msra.mxu0 0.0
        %288 = vmatprep.subr.mxu0 0.0
        %289 = vmatpush2.msra.mxu0 0.0
        %290 = vmatprep.subr.mxu0 0.0
        %291 = vmatpush2.msra.mxu0 0.0
        %292 = vmatprep.subr.mxu0 0.0
        %293 = vmatpush2.msra.mxu0 0.0
        %294 = vmatprep.subr.mxu0 0.0
        %295 = vmatpush2.msra.mxu0 0.0
        %296 = vmatprep.subr.mxu0 0.0
        %297 = vmatpush2.msra.mxu0 0.0
        %298 = vmatprep.subr.mxu0 0.0
        %299 = vmatpush2.msra.mxu0 0.0
        %300 = vmatprep.subr.mxu0 0.0
        %301 = vmatpush2.msra.mxu0 0.0
        %302 = vmatprep.subr.mxu0 0.0
        %303 = vmatpush2.msra.mxu0 0.0
        %304 = vmatprep.subr.mxu0 0.0
        %305 = vmatpush2.msra.mxu0 0.0
        %306 = vmatprep.subr.mxu0 0.0
        %307 = vmatpush2.msra.mxu0 0.0
        %308 = vmatprep.subr.mxu0 0.0
        %309 = vmatpush2.msra.mxu0 0.0
        %310 = vmatprep.subr.mxu0 0.0
        %311 = vmatpush2.msra.mxu0 0.0
        %312 = vmatprep.mubr.f32.mxu0 0.0
        %313 = vmatmul.mubr.f32.gmra.mxu0 %v242
        %v314 = vpop.f32.mrf.mxu0
        %v315 = vadd.f32 0.0, %v314
        %v316 = vpop.f32.mrf.mxu0
        %v317 = vadd.f32 0.0, %v316
        %318 = vdwg.mxu0
        %v319 = vmul.f32 %v315, 2.0
        %v320 = vmul.f32 %v317, 2.0
        %v321 = vsub.f32 2.0, %v319
        %v322 = vsub.f32 2.0, %v320
        %v323 = vmax.f32 %v321, 0.0
        %v324 = vmax.f32 %v322, 0.0
        %v325 = vrsqrt.pop %v323
        %v326 = vmul.f32 %v323, %v325
        %vm327 = vcmp.eq.f32.partialorder %v323, inf
        %v328 = vsel %vm327, %v323, %v326
        %vm329 = vcmp.eq.f32.partialorder %v323, 0.0
        %v330 = vand.u32 %v323, 2147483648
        %v331 = vsel %vm329, %v330, %v328
        %v332 = vrsqrt.pop %v324
        %v333 = vmul.f32 %v324, %v332
        %vm334 = vcmp.eq.f32.partialorder %v324, inf
        %v335 = vsel %vm334, %v324, %v333
        %vm336 = vcmp.eq.f32.partialorder %v324, 0.0
        %v337 = vand.u32 %v324, 2147483648
        %v338 = vsel %vm336, %v337, %v335
        %s339 = sld [smem:[#allocation2]]
        %v340 = vstv %s339
        %v341 = vmul.f32 %v340, %v331
        %v342 = vmul.f32 %v340, %v338
        %343 = vst [vmem:[%s205] sm:$0xff] %v341
        %344 = vst [vmem:[%s205 + $0x8] sm:$0xff] %v342
        %s345 = sand.u32 %s113, 1
        %s346 = scalar_lea.sflag [#allocation5], %s345
        %s347 = sand.u32 %s113, 1
        %s348 = smul.addr %s347, 16
        %s349 = scalar_lea.vmem [#allocation6], %s348
        // Predicated region
        $region37: #{tpu_custom_call.1} parent=31 // pred_check
          %p350 = pneg %p123
        $region38: #{tpu_custom_call.1} parent=31 // pred_check_branch
          %352 = sbr.rel (%p350) target = $region40
        $region39: #{tpu_custom_call.1} parent=31 // pred_region
          %s353 = smul.u32 2, %s26
          %s355 = ssub.s32 256, 256
          %356 = vsyncadd %s346, %s355
          %s357 = smul.addr %s25, 2
          %s358 = sadd.s32 %s353, %s357
          %s359 = smul.addr %s358, 128
          %s360 = scalar_lea.hbm %s3, %s359
          %s362 = sshll.u32 %s349, 4
          %s363 = int_to_ptr.vmem [resolvable:$true] %s362
          %365 = dma.vmem_to_hbm [thread:$0]  %s363, 256, %s360, %s346
        $region40: #{tpu_custom_call.1} parent=31 // pred_fallthru
          _
      $region32: #{tpu_custom_call.1} parent=5 // pred_fallthru
        _
      %p366 = scmp.le.s32.totalorder 2, %s16
      // Predicated region
      $region41: #{tpu_custom_call.1} parent=5 // pred_check
        %p367 = pneg %p366
      $region42: #{tpu_custom_call.1} parent=5 // pred_check_branch
        %369 = sbr.rel (%p367) target = $region44
      $region43: #{tpu_custom_call.1} parent=5 // pred_region
        %s370 = ssub.s32 %s16, 2
        // Predicated region
        $region45: #{tpu_custom_call.1} parent=43 // pred_check
          %p371 = pneg %p129
        $region46: #{tpu_custom_call.1} parent=43 // pred_check_branch
          %373 = sbr.rel (%p371) target = $region48
        $region47: #{tpu_custom_call.1} parent=43 // pred_region
          %s374 = sand.u32 %s114, 1
          %s375 = scalar_lea.sflag [#allocation5], %s374
          %s376 = sand.u32 %s114, 1
          %s377 = smul.addr %s376, 16
          %s378 = scalar_lea.vmem [#allocation6], %s377
          %379 = dma.done %s375, 256
        $region48: #{tpu_custom_call.1} parent=43 // pred_fallthru
          _
      $region44: #{tpu_custom_call.1} parent=5 // pred_fallthru
        _
    $region6: #{tpu_custom_call.1} parent=1 // loop_footer
      %s20 = sadd.s32 1, %s16
    $region7: #{tpu_custom_call.1} parent=1 // loop_footer_branch
      %15 = sbr.rel target = $region3
    $region8: #{tpu_custom_call.1} parent=1 // loop_exit
      _
    %380 = vsyncpa [#allocation4], 1
    %s381 = scalar_lea.sflag [#allocation4], 1
    %382 = vsyncpa %s381, 1
    %383 = vsyncpa [#allocation5], 1
    %s384 = scalar_lea.sflag [#allocation5], 1
    %385 = vsyncpa %s384, 1

</llo_original>
